<compile_context>
chip_gen: v5e
topology: v5e:2x2
jax: 0.10.0
libtpu: 0.0.40
codegen_flags: <defaults>
</compile_context>

<pallas_src>
from math import ceil

import jax
import jax.numpy as jnp
from jax import lax
from jax.experimental import pallas as pl
from jax.experimental.pallas import tpu as pltpu

V_TH = 0.5  # LIF firing threshold
# TODO(synk): LIF_Act / Spiking{Linear,Conv,BatchNorm} are not defined in the provided
# source; modeled as single-timestep LIF (Heaviside spike at V_TH) and the Spiking*
# wrappers as the wrapped layer (BatchNorm in inference mode, folded to scale/shift).


# --------------------------------------------------------------------------------------
# Fused kernel: mlp1 + mlp2 + (x_star @ transform) + depthwise Conv1d + Linear
# --------------------------------------------------------------------------------------
def spike_xconv_kernel(pos_ref, xg_ref,
                       w1_ref, ep1_ref, w2_ref, ep2_ref,
                       wm2_ref, ep3_ref, wg1_ref, ep4_ref,
                       wg2_ref, bg2_ref,
                       wbig_ref, wfd_ref, wfi_ref, bf_ref,
                       out_ref):
    f32 = jnp.float32

    def spike_bn(z, ep):
        # LIF spike with bias folded into the threshold, followed by folded inference BN:
        #   where(Wx >= V_TH - b, scale + shift, shift)
        return jnp.where(z >= ep[0:1, :], ep[1:2, :], ep[2:3, :])

    pos = pos_ref[...]                                                      # (N, K*D)

    # ---- mlp1 in per-point block-diagonal form: (N, K*D) -> (N, K*Cd) ----
    h = spike_bn(jnp.dot(pos, w1_ref[...], preferred_element_type=f32), ep1_ref)
    xsd = spike_bn(jnp.dot(h, w2_ref[...], preferred_element_type=f32), ep2_ref)

    # ---- mlp2: per-point transform matrices, flattened row-major (N, K*K) ----
    t = spike_bn(jnp.dot(pos, wm2_ref[...], preferred_element_type=f32), ep3_ref)
    u = spike_bn(jnp.dot(t, wg1_ref[...], preferred_element_type=f32), ep4_ref)
    tm = jnp.dot(u, wg2_ref[...], preferred_element_type=f32) + bg2_ref[...]  # (N, K*K)

    # ---- x_star @ T  +  depthwise Conv1d  +  Linear, as wide lane-aligned matmuls ----
    # g[n, col] = sum_j T[n,l,j] * Wconv[c*dm+m, j]   (cols: delta block (m,l,cd) then
    #                                                  in-channel block (m,l,ci))
    g = jnp.dot(tm, wbig_ref[...], preferred_element_type=f32)              # (N, dm*K*C)

    n_kcd = xsd.shape[1]                 # K * C_delta  (== 128 here -> aligned slices)
    dm = wfd_ref.shape[0]
    d_cols = dm * n_kcd

    # in-channel part (x_g pre-tiled over dm in the wrapper): one full-width matmul
    acc = jnp.dot(g[:, d_cols:] * xg_ref[...], wfi_ref[...],
                  preferred_element_type=f32)                               # (N, c_out)
    # delta-channel part: dm (=2) vreg-aligned 128-lane slices, one matmul each
    for m in range(dm):
        acc = acc + jnp.dot(g[:, m * n_kcd:(m + 1) * n_kcd] * xsd, wfd_ref[m],
                            preferred_element_type=f32)
    out_ref[...] = acc + bf_ref[...]


def run_spike_xconv(fp, pos_kd, xg_tiled, n, c_out):
    def full(shape):
        return pl.BlockSpec(shape, lambda i: (0,) * len(shape))

    args = (pos_kd, xg_tiled,
            fp["w1_bd"], fp["ep1"], fp["w2_bd"], fp["ep2"],
            fp["wm2"], fp["ep3"], fp["wg1_bd"], fp["ep4"],
            fp["wg2_eff"], fp["bg2_eff"],
            fp["wbig"], fp["wfin_d"], fp["wfin_i"], fp["bfin"])
    return pl.pallas_call(
        spike_xconv_kernel,
        out_shape=jax.ShapeDtypeStruct((n, c_out), jnp.float32),
        grid=(1,),  # whole problem in one step: everything fits trivially in VMEM
        in_specs=[full(a.shape) for a in args],
        out_specs=full((n, c_out)),
        compiler_params=pltpu.CompilerParams(dimension_semantics=("arbitrary",)),
    )(*args)


# --------------------------------------------------------------------------------------
# Parameter helpers (deterministic, synthetic) + wrapper-side folding
# --------------------------------------------------------------------------------------
def bn_fold(key, c, eps=1e-5):
    k1, k2, k3, k4 = jax.random.split(key, 4)
    gamma = 1.0 + 0.1 * jax.random.normal(k1, (c,))
    beta = 0.1 * jax.random.normal(k2, (c,))
    mean = 0.1 * jax.random.normal(k3, (c,))
    var = 1.0 + 0.1 * jax.random.uniform(k4, (c,))
    scale = gamma / jnp.sqrt(var + eps)
    shift = beta - mean * scale
    return scale.astype(jnp.float32), shift.astype(jnp.float32)


def block_diag(w, reps):
    r, c = w.shape
    out = jnp.zeros((reps * r, reps * c), jnp.float32)
    for k in range(reps):
        out = out.at[k * r:(k + 1) * r, k * c:(k + 1) * c].set(w)
    return out


def conv_block_diag(wconv, K):
    # wconv: (K*K, 1, K) = Conv1d(K, K*K, K, groups=K).weight (out, in/groups, kernel tap)
    bd = jnp.zeros((K * K, K * K), jnp.float32)
    for k in range(K):
        blk = wconv[k * K:(k + 1) * K, 0, :]            # (out q, tap j)
        bd = bd.at[k * K:(k + 1) * K, k * K:(k + 1) * K].set(blk.T)
    return bd


def spike_epilogue(b, scale, shift, reps=1):
    # spike = (Wx + b >= V_TH)  <=>  Wx >= V_TH - b ;  spike*scale + shift folded to
    # where(., scale+shift, shift).  Rows: [thr, hi, lo], tiled `reps` times along lanes.
    thr = jnp.tile((V_TH - b).reshape(1, -1), (1, reps))
    hi = jnp.tile((scale + shift).reshape(1, -1), (1, reps))
    lo = jnp.tile(shift.reshape(1, -1), (1, reps))
    return jnp.concatenate([thr, hi, lo], axis=0).astype(jnp.float32)


def fold_params(rp, D, K, Cd, Cin, c_out):
    C = Cd + Cin
    dm = int(ceil(c_out / C))
    fp = {}

    # mlp1 (per-point, K-block-diagonal form)
    fp["w1_bd"] = block_diag(rp["w1"], K)                               # (K*D, K*Cd)
    fp["ep1"] = spike_epilogue(rp["b1"], rp["s1"], rp["h1"], reps=K)
    fp["w2_bd"] = block_diag(rp["w2"], K)                               # (K*Cd, K*Cd)
    fp["ep2"] = spike_epilogue(rp["b2"], rp["s2"], rp["h2"], reps=K)

    # mlp2
    fp["wm2"] = rp["wm2"]                                               # (K*D, K*K)
    fp["ep3"] = spike_epilogue(rp["bm2"], rp["s3"], rp["h3"])
    fp["wg1_bd"] = conv_block_diag(rp["wg1_conv"], K)                   # (K*K, K*K)
    fp["ep4"] = spike_epilogue(rp["bg1"], rp["s4"], rp["h4"])
    wg2_bd = conv_block_diag(rp["wg2_conv"], K)
    fp["wg2_eff"] = wg2_bd * rp["s5"].reshape(1, -1)                    # BN (no act) folded
    fp["bg2_eff"] = (rp["bg2"] * rp["s5"] + rp["h5"]).reshape(1, -1)

    # final: transform contraction + depthwise Conv1d(C, C*dm, K, groups=C) + Linear
    wc = rp["wc_conv"][:, 0, :]                                         # (C*dm, K), row g*dm+m
    wct = jnp.transpose(wc.reshape(C, dm, K), (1, 2, 0))                # [m, j, g]
    wbig = jnp.zeros((K * K, dm * K * C), jnp.float32)
    base = dm * K * Cd
    for m in range(dm):
        for l in range(K):
            wbig = wbig.at[l * K:(l + 1) * K,
                           m * K * Cd + l * Cd: m * K * Cd + (l + 1) * Cd
                           ].set(wct[m, :, :Cd])
            wbig = wbig.at[l * K:(l + 1) * K,
                           base + m * K * Cin + l * Cin: base + m * K * Cin + (l + 1) * Cin
                           ].set(wct[m, :, Cd:])
    fp["wbig"] = wbig                                                   # (K*K, dm*K*C)

    wl_r = rp["wl"].reshape(C, dm, c_out)                               # [g, m, o]
    wfin_d = jnp.zeros((dm, K * Cd, c_out), jnp.float32)
    wfin_i = jnp.zeros((dm * K * Cin, c_out), jnp.float32)
    for m in range(dm):
        for l in range(K):
            wfin_d = wfin_d.at[m, l * Cd:(l + 1) * Cd, :].set(wl_r[:Cd, m, :])
            wfin_i = wfin_i.at[m * K * Cin + l * Cin: m * K * Cin + (l + 1) * Cin, :
                               ].set(wl_r[Cd:, m, :])
    fp["wfin_d"] = wfin_d
    fp["wfin_i"] = wfin_i
    # depthwise-conv bias pushed through the Linear
    fp["bfin"] = (rp["bl"] + rp["bc"] @ rp["wl"]).reshape(1, c_out)
    return fp


if __name__ == "__main__":
    # Small shapes consistent with the module's forward
    N, D, K = 64, 3, 8
    C_in, C_delta, C_out = 8, 16, 32          # hidden_channels passed explicitly
    C = C_in + C_delta
    dm = int(ceil(C_out / C))                 # depth_multiplier

    keys = jax.random.split(jax.random.PRNGKey(0), 32)
    pos = jax.random.normal(keys[0], (N, D), jnp.float32)
    x = jax.random.normal(keys[1], (N, C_in), jnp.float32)

    ws = 0.5  # weight scale
    rp = {}
    # mlp1
    rp["w1"] = ws * jax.random.normal(keys[2], (D, C_delta), jnp.float32)
    rp["b1"] = 0.1 * jax.random.normal(keys[3], (C_delta,))
    rp["s1"], rp["h1"] = bn_fold(keys[4], C_delta)
    rp["w2"] = ws * jax.random.normal(keys[5], (C_delta, C_delta), jnp.float32)
    rp["b2"] = 0.1 * jax.random.normal(keys[6], (C_delta,))
    rp["s2"], rp["h2"] = bn_fold(keys[7], C_delta)
    # mlp2
    rp["wm2"] = ws * jax.random.normal(keys[8], (K * D, K * K), jnp.float32)
    rp["bm2"] = 0.1 * jax.random.normal(keys[9], (K * K,))
    rp["s3"], rp["h3"] = bn_fold(keys[10], K * K)
    rp["wg1_conv"] = ws * jax.random.normal(keys[11], (K * K, 1, K), jnp.float32)
    rp["bg1"] = 0.1 * jax.random.normal(keys[12], (K * K,))
    rp["s4"], rp["h4"] = bn_fold(keys[13], K * K)
    rp["wg2_conv"] = ws * jax.random.normal(keys[14], (K * K, 1, K), jnp.float32)
    rp["bg2"] = 0.1 * jax.random.normal(keys[15], (K * K,))
    rp["s5"], rp["h5"] = bn_fold(keys[16], K * K)
    # final depthwise Conv1d(C, C*dm, K, groups=C) + Linear(C*dm, C_out)
    rp["wc_conv"] = ws * jax.random.normal(keys[17], (C * dm, 1, K), jnp.float32)
    rp["bc"] = 0.1 * jax.random.normal(keys[18], (C * dm,))
    rp["wl"] = ws * jax.random.normal(keys[19], (C * dm, C_out), jnp.float32)
    rp["bl"] = 0.1 * jax.random.normal(keys[20], (C_out,))

    fp = fold_params(rp, D, K, C_delta, C_in, C_out)

    # ---- glue: kNN graph + neighbor gathers (plain JAX) ----
    # knn_graph(pos, K, loop=True, flow='target_to_source')
    d2 = jnp.sum((pos[:, None, :] - pos[None, :, :]) ** 2, axis=-1)
    _, idx = lax.top_k(-d2, K)                       # (N, K) K nearest incl. self
    pos_diff = pos[idx] - pos[:, None, :]            # (N, K, D) = pos[col] - pos[row]
    pos_kd = pos_diff.reshape(N, K * D)              # per-point, k-major
    xg_flat = x[idx].reshape(N, K * C_in)            # (N, K*C_in), k-major
    xg_tiled = jnp.tile(xg_flat, (1, dm))            # pre-tiled over depth_multiplier

    # ---- run the single fused kernel ----
    out = run_spike_xconv(fp, pos_kd, xg_tiled, N, C_out)   # (N, C_out)
    out = jax.block_until_ready(out)

    assert out.shape == (N, C_out) and out.dtype == jnp.float32
    assert bool(jnp.all(jnp.isfinite(out)))
    print("KERNEL_OK")
</pallas_src>

<mosaic_0001>
module attributes {stable_mosaic.version = 11 : i64} {
  func.func @spike_xconv_kernel(%arg0: i32, %arg1: memref<64x24xf32, #tpu.memory_space<vmem>>, %arg2: memref<64x128xf32, #tpu.memory_space<vmem>>, %arg3: memref<24x128xf32, #tpu.memory_space<vmem>>, %arg4: memref<3x128xf32, #tpu.memory_space<vmem>>, %arg5: memref<128x128xf32, #tpu.memory_space<vmem>>, %arg6: memref<3x128xf32, #tpu.memory_space<vmem>>, %arg7: memref<24x64xf32, #tpu.memory_space<vmem>>, %arg8: memref<3x64xf32, #tpu.memory_space<vmem>>, %arg9: memref<64x64xf32, #tpu.memory_space<vmem>>, %arg10: memref<3x64xf32, #tpu.memory_space<vmem>>, %arg11: memref<64x64xf32, #tpu.memory_space<vmem>>, %arg12: memref<1x64xf32, #tpu.memory_space<vmem>>, %arg13: memref<64x384xf32, #tpu.memory_space<vmem>>, %arg14: memref<2x128x32xf32, #tpu.memory_space<vmem>>, %arg15: memref<128x32xf32, #tpu.memory_space<vmem>>, %arg16: memref<1x32xf32, #tpu.memory_space<vmem>>, %arg17: memref<64x32xf32, #tpu.memory_space<vmem>>) attributes {dimension_semantics = [#tpu.dimension_semantics<arbitrary>], iteration_bounds = array<i64: 1>, scalar_prefetch = 0 : i64, scratch_operands = 0 : i64, tpu.core_type = #tpu.core_type<tc>, window_params = [{pipeline_mode = #tpu.pipeline_mode<synchronous>, transform_indices = @transform_0, window_bounds = array<i64: 64, 24>}, {pipeline_mode = #tpu.pipeline_mode<synchronous>, transform_indices = @transform_1, window_bounds = array<i64: 64, 128>}, {pipeline_mode = #tpu.pipeline_mode<synchronous>, transform_indices = @transform_2, window_bounds = array<i64: 24, 128>}, {pipeline_mode = #tpu.pipeline_mode<synchronous>, transform_indices = @transform_3, window_bounds = array<i64: 3, 128>}, {pipeline_mode = #tpu.pipeline_mode<synchronous>, transform_indices = @transform_4, window_bounds = array<i64: 128, 128>}, {pipeline_mode = #tpu.pipeline_mode<synchronous>, transform_indices = @transform_5, window_bounds = array<i64: 3, 128>}, {pipeline_mode = #tpu.pipeline_mode<synchronous>, transform_indices = @transform_6, window_bounds = array<i64: 24, 64>}, {pipeline_mode = #tpu.pipeline_mode<synchronous>, transform_indices = @transform_7, window_bounds = array<i64: 3, 64>}, {pipeline_mode = #tpu.pipeline_mode<synchronous>, transform_indices = @transform_8, window_bounds = array<i64: 64, 64>}, {pipeline_mode = #tpu.pipeline_mode<synchronous>, transform_indices = @transform_9, window_bounds = array<i64: 3, 64>}, {pipeline_mode = #tpu.pipeline_mode<synchronous>, transform_indices = @transform_10, window_bounds = array<i64: 64, 64>}, {pipeline_mode = #tpu.pipeline_mode<synchronous>, transform_indices = @transform_11, window_bounds = array<i64: 1, 64>}, {pipeline_mode = #tpu.pipeline_mode<synchronous>, transform_indices = @transform_12, window_bounds = array<i64: 64, 384>}, {pipeline_mode = #tpu.pipeline_mode<synchronous>, transform_indices = @transform_13, window_bounds = array<i64: 2, 128, 32>}, {pipeline_mode = #tpu.pipeline_mode<synchronous>, transform_indices = @transform_14, window_bounds = array<i64: 128, 32>}, {pipeline_mode = #tpu.pipeline_mode<synchronous>, transform_indices = @transform_15, window_bounds = array<i64: 1, 32>}, {pipeline_mode = #tpu.pipeline_mode<synchronous>, transform_indices = @transform_16, window_bounds = array<i64: 64, 32>}]} {
    %c0 = arith.constant 0 : index
    %c0_0 = arith.constant 0 : index
    %0 = vector.load %arg1[%c0, %c0_0] : memref<64x24xf32, #tpu.memory_space<vmem>>, vector<64x24xf32>
    %c0_1 = arith.constant 0 : index
    %c0_2 = arith.constant 0 : index
    %1 = vector.load %arg3[%c0_1, %c0_2] : memref<24x128xf32, #tpu.memory_space<vmem>>, vector<24x128xf32>
    %cst = arith.constant dense<0.000000e+00> : vector<64x128xf32>
    %2 = tpu.matmul %0, %1, %cst {dimension_numbers = #tpu.dot_dimension_numbers<[1], [0], [0], [1], [0, 0, 1, 1], [], []>} : vector<64x24xf32>, vector<24x128xf32>, vector<64x128xf32> -> vector<64x128xf32>
    %c0_3 = arith.constant 0 : index
    %c0_4 = arith.constant 0 : index
    %3 = vector.load %arg4[%c0_3, %c0_4] : memref<3x128xf32, #tpu.memory_space<vmem>>, vector<1x128xf32>
    %4 = vector.broadcast %3 : vector<1x128xf32> to vector<64x128xf32>
    %5 = arith.cmpf oge, %2, %4 : vector<64x128xf32>
    %c1 = arith.constant 1 : index
    %c0_5 = arith.constant 0 : index
    %6 = vector.load %arg4[%c1, %c0_5] : memref<3x128xf32, #tpu.memory_space<vmem>>, vector<1x128xf32>
    %c2 = arith.constant 2 : index
    %c0_6 = arith.constant 0 : index
    %7 = vector.load %arg4[%c2, %c0_6] : memref<3x128xf32, #tpu.memory_space<vmem>>, vector<1x128xf32>
    %8 = vector.shape_cast %6 : vector<1x128xf32> to vector<1x128xf32>
    %9 = vector.broadcast %8 : vector<1x128xf32> to vector<64x128xf32>
    %10 = vector.shape_cast %7 : vector<1x128xf32> to vector<1x128xf32>
    %11 = vector.broadcast %10 : vector<1x128xf32> to vector<64x128xf32>
    %12 = arith.select %5, %9, %11 : vector<64x128xi1>, vector<64x128xf32>
    %c0_7 = arith.constant 0 : index
    %c0_8 = arith.constant 0 : index
    %13 = vector.load %arg5[%c0_7, %c0_8] : memref<128x128xf32, #tpu.memory_space<vmem>>, vector<128x128xf32>
    %cst_9 = arith.constant dense<0.000000e+00> : vector<64x128xf32>
    %14 = tpu.matmul %12, %13, %cst_9 {dimension_numbers = #tpu.dot_dimension_numbers<[1], [0], [0], [1], [0, 0, 1, 1], [], []>} : vector<64x128xf32>, vector<128x128xf32>, vector<64x128xf32> -> vector<64x128xf32>
    %c0_10 = arith.constant 0 : index
    %c0_11 = arith.constant 0 : index
    %15 = vector.load %arg6[%c0_10, %c0_11] : memref<3x128xf32, #tpu.memory_space<vmem>>, vector<1x128xf32>
    %16 = vector.broadcast %15 : vector<1x128xf32> to vector<64x128xf32>
    %17 = arith.cmpf oge, %14, %16 : vector<64x128xf32>
    %c1_12 = arith.constant 1 : index
    %c0_13 = arith.constant 0 : index
    %18 = vector.load %arg6[%c1_12, %c0_13] : memref<3x128xf32, #tpu.memory_space<vmem>>, vector<1x128xf32>
    %c2_14 = arith.constant 2 : index
    %c0_15 = arith.constant 0 : index
    %19 = vector.load %arg6[%c2_14, %c0_15] : memref<3x128xf32, #tpu.memory_space<vmem>>, vector<1x128xf32>
    %20 = vector.shape_cast %18 : vector<1x128xf32> to vector<1x128xf32>
    %21 = vector.broadcast %20 : vector<1x128xf32> to vector<64x128xf32>
    %22 = vector.shape_cast %19 : vector<1x128xf32> to vector<1x128xf32>
    %23 = vector.broadcast %22 : vector<1x128xf32> to vector<64x128xf32>
    %24 = arith.select %17, %21, %23 : vector<64x128xi1>, vector<64x128xf32>
    %c0_16 = arith.constant 0 : index
    %c0_17 = arith.constant 0 : index
    %25 = vector.load %arg7[%c0_16, %c0_17] : memref<24x64xf32, #tpu.memory_space<vmem>>, vector<24x64xf32>
    %cst_18 = arith.constant dense<0.000000e+00> : vector<64x64xf32>
    %26 = tpu.matmul %0, %25, %cst_18 {dimension_numbers = #tpu.dot_dimension_numbers<[1], [0], [0], [1], [0, 0, 1, 1], [], []>} : vector<64x24xf32>, vector<24x64xf32>, vector<64x64xf32> -> vector<64x64xf32>
    %c0_19 = arith.constant 0 : index
    %c0_20 = arith.constant 0 : index
    %27 = vector.load %arg8[%c0_19, %c0_20] : memref<3x64xf32, #tpu.memory_space<vmem>>, vector<1x64xf32>
    %28 = vector.broadcast %27 : vector<1x64xf32> to vector<64x64xf32>
    %29 = arith.cmpf oge, %26, %28 : vector<64x64xf32>
    %c1_21 = arith.constant 1 : index
    %c0_22 = arith.constant 0 : index
    %30 = vector.load %arg8[%c1_21, %c0_22] : memref<3x64xf32, #tpu.memory_space<vmem>>, vector<1x64xf32>
    %c2_23 = arith.constant 2 : index
    %c0_24 = arith.constant 0 : index
    %31 = vector.load %arg8[%c2_23, %c0_24] : memref<3x64xf32, #tpu.memory_space<vmem>>, vector<1x64xf32>
    %32 = vector.shape_cast %30 : vector<1x64xf32> to vector<1x64xf32>
    %33 = vector.broadcast %32 : vector<1x64xf32> to vector<64x64xf32>
    %34 = vector.shape_cast %31 : vector<1x64xf32> to vector<1x64xf32>
    %35 = vector.broadcast %34 : vector<1x64xf32> to vector<64x64xf32>
    %36 = arith.select %29, %33, %35 : vector<64x64xi1>, vector<64x64xf32>
    %c0_25 = arith.constant 0 : index
    %c0_26 = arith.constant 0 : index
    %37 = vector.load %arg9[%c0_25, %c0_26] : memref<64x64xf32, #tpu.memory_space<vmem>>, vector<64x64xf32>
    %cst_27 = arith.constant dense<0.000000e+00> : vector<64x64xf32>
    %38 = tpu.matmul %36, %37, %cst_27 {dimension_numbers = #tpu.dot_dimension_numbers<[1], [0], [0], [1], [0, 0, 1, 1], [], []>} : vector<64x64xf32>, vector<64x64xf32>, vector<64x64xf32> -> vector<64x64xf32>
    %c0_28 = arith.constant 0 : index
    %c0_29 = arith.constant 0 : index
    %39 = vector.load %arg10[%c0_28, %c0_29] : memref<3x64xf32, #tpu.memory_space<vmem>>, vector<1x64xf32>
    %40 = vector.broadcast %39 : vector<1x64xf32> to vector<64x64xf32>
    %41 = arith.cmpf oge, %38, %40 : vector<64x64xf32>
    %c1_30 = arith.constant 1 : index
    %c0_31 = arith.constant 0 : index
    %42 = vector.load %arg10[%c1_30, %c0_31] : memref<3x64xf32, #tpu.memory_space<vmem>>, vector<1x64xf32>
    %c2_32 = arith.constant 2 : index
    %c0_33 = arith.constant 0 : index
    %43 = vector.load %arg10[%c2_32, %c0_33] : memref<3x64xf32, #tpu.memory_space<vmem>>, vector<1x64xf32>
    %44 = vector.shape_cast %42 : vector<1x64xf32> to vector<1x64xf32>
    %45 = vector.broadcast %44 : vector<1x64xf32> to vector<64x64xf32>
    %46 = vector.shape_cast %43 : vector<1x64xf32> to vector<1x64xf32>
    %47 = vector.broadcast %46 : vector<1x64xf32> to vector<64x64xf32>
    %48 = arith.select %41, %45, %47 : vector<64x64xi1>, vector<64x64xf32>
    %c0_34 = arith.constant 0 : index
    %c0_35 = arith.constant 0 : index
    %49 = vector.load %arg11[%c0_34, %c0_35] : memref<64x64xf32, #tpu.memory_space<vmem>>, vector<64x64xf32>
    %cst_36 = arith.constant dense<0.000000e+00> : vector<64x64xf32>
    %50 = tpu.matmul %48, %49, %cst_36 {dimension_numbers = #tpu.dot_dimension_numbers<[1], [0], [0], [1], [0, 0, 1, 1], [], []>} : vector<64x64xf32>, vector<64x64xf32>, vector<64x64xf32> -> vector<64x64xf32>
    %c0_37 = arith.constant 0 : index
    %c0_38 = arith.constant 0 : index
    %51 = vector.load %arg12[%c0_37, %c0_38] : memref<1x64xf32, #tpu.memory_space<vmem>>, vector<1x64xf32>
    %52 = vector.broadcast %51 : vector<1x64xf32> to vector<64x64xf32>
    %53 = arith.addf %50, %52 : vector<64x64xf32>
    %c0_39 = arith.constant 0 : index
    %c0_40 = arith.constant 0 : index
    %54 = vector.load %arg13[%c0_39, %c0_40] : memref<64x384xf32, #tpu.memory_space<vmem>>, vector<64x384xf32>
    %cst_41 = arith.constant dense<0.000000e+00> : vector<64x384xf32>
    %55 = tpu.matmul %53, %54, %cst_41 {dimension_numbers = #tpu.dot_dimension_numbers<[1], [0], [0], [1], [0, 0, 1, 1], [], []>} : vector<64x64xf32>, vector<64x384xf32>, vector<64x384xf32> -> vector<64x384xf32>
    %56 = vector.extract_strided_slice %55 {offsets = [0, 256], sizes = [64, 128], strides = [1, 1]} : vector<64x384xf32> to vector<64x128xf32>
    %c0_42 = arith.constant 0 : index
    %c0_43 = arith.constant 0 : index
    %57 = vector.load %arg2[%c0_42, %c0_43] : memref<64x128xf32, #tpu.memory_space<vmem>>, vector<64x128xf32>
    %58 = arith.mulf %56, %57 : vector<64x128xf32>
    %c0_44 = arith.constant 0 : index
    %c0_45 = arith.constant 0 : index
    %59 = vector.load %arg15[%c0_44, %c0_45] : memref<128x32xf32, #tpu.memory_space<vmem>>, vector<128x32xf32>
    %cst_46 = arith.constant dense<0.000000e+00> : vector<64x32xf32>
    %60 = tpu.matmul %58, %59, %cst_46 {dimension_numbers = #tpu.dot_dimension_numbers<[1], [0], [0], [1], [0, 0, 1, 1], [], []>} : vector<64x128xf32>, vector<128x32xf32>, vector<64x32xf32> -> vector<64x32xf32>
    %61 = vector.extract_strided_slice %55 {offsets = [0, 0], sizes = [64, 128], strides = [1, 1]} : vector<64x384xf32> to vector<64x128xf32>
    %62 = arith.mulf %61, %24 : vector<64x128xf32>
    %c0_47 = arith.constant 0 : index
    %c0_48 = arith.constant 0 : index
    %c0_49 = arith.constant 0 : index
    %63 = vector.load %arg14[%c0_47, %c0_48, %c0_49] : memref<2x128x32xf32, #tpu.memory_space<vmem>>, vector<1x128x32xf32>
    %64 = vector.shape_cast %63 : vector<1x128x32xf32> to vector<128x32xf32>
    %cst_50 = arith.constant dense<0.000000e+00> : vector<64x32xf32>
    %65 = tpu.matmul %62, %64, %cst_50 {dimension_numbers = #tpu.dot_dimension_numbers<[1], [0], [0], [1], [0, 0, 1, 1], [], []>} : vector<64x128xf32>, vector<128x32xf32>, vector<64x32xf32> -> vector<64x32xf32>
    %66 = arith.addf %60, %65 : vector<64x32xf32>
    %67 = vector.extract_strided_slice %55 {offsets = [0, 128], sizes = [64, 128], strides = [1, 1]} : vector<64x384xf32> to vector<64x128xf32>
    %68 = arith.mulf %67, %24 : vector<64x128xf32>
    %c1_51 = arith.constant 1 : index
    %c0_52 = arith.constant 0 : index
    %c0_53 = arith.constant 0 : index
    %69 = vector.load %arg14[%c1_51, %c0_52, %c0_53] : memref<2x128x32xf32, #tpu.memory_space<vmem>>, vector<1x128x32xf32>
    %70 = vector.shape_cast %69 : vector<1x128x32xf32> to vector<128x32xf32>
    %cst_54 = arith.constant dense<0.000000e+00> : vector<64x32xf32>
    %71 = tpu.matmul %68, %70, %cst_54 {dimension_numbers = #tpu.dot_dimension_numbers<[1], [0], [0], [1], [0, 0, 1, 1], [], []>} : vector<64x128xf32>, vector<128x32xf32>, vector<64x32xf32> -> vector<64x32xf32>
    %72 = arith.addf %66, %71 : vector<64x32xf32>
    %c0_55 = arith.constant 0 : index
    %c0_56 = arith.constant 0 : index
    %73 = vector.load %arg16[%c0_55, %c0_56] : memref<1x32xf32, #tpu.memory_space<vmem>>, vector<1x32xf32>
    %74 = vector.broadcast %73 : vector<1x32xf32> to vector<64x32xf32>
    %75 = arith.addf %72, %74 : vector<64x32xf32>
    %c0_57 = arith.constant 0 : index
    %c0_58 = arith.constant 0 : index
    %76 = vector.load %arg17[%c0_57, %c0_58] : memref<64x32xf32, #tpu.memory_space<vmem>>, vector<64x32xf32>
    tpu.vector_store %arg17[%c0_57, %c0_58], %75 {strides = array<i32>} : memref<64x32xf32, #tpu.memory_space<vmem>>, vector<64x32xf32>,
    return
  }
  func.func @transform_0(%arg0: i32) -> (i32, i32) {
    %c0_i32 = arith.constant 0 : i32
    %c0_i32_0 = arith.constant 0 : i32
    %c0_i32_1 = arith.constant 0 : i32
    return %c0_i32, %c0_i32_0 : i32, i32
  }
  func.func @transform_1(%arg0: i32) -> (i32, i32) {
    %c0_i32 = arith.constant 0 : i32
    %c0_i32_0 = arith.constant 0 : i32
    %c0_i32_1 = arith.constant 0 : i32
    return %c0_i32, %c0_i32_0 : i32, i32
  }
  func.func @transform_2(%arg0: i32) -> (i32, i32) {
    %c0_i32 = arith.constant 0 : i32
    %c0_i32_0 = arith.constant 0 : i32
    %c0_i32_1 = arith.constant 0 : i32
    return %c0_i32, %c0_i32_0 : i32, i32
  }
  func.func @transform_3(%arg0: i32) -> (i32, i32) {
    %c0_i32 = arith.constant 0 : i32
    %c0_i32_0 = arith.constant 0 : i32
    %c0_i32_1 = arith.constant 0 : i32
    return %c0_i32, %c0_i32_0 : i32, i32
  }
  func.func @transform_4(%arg0: i32) -> (i32, i32) {
    %c0_i32 = arith.constant 0 : i32
    %c0_i32_0 = arith.constant 0 : i32
    %c0_i32_1 = arith.constant 0 : i32
    return %c0_i32, %c0_i32_0 : i32, i32
  }
  func.func @transform_5(%arg0: i32) -> (i32, i32) {
    %c0_i32 = arith.constant 0 : i32
    %c0_i32_0 = arith.constant 0 : i32
    %c0_i32_1 = arith.constant 0 : i32
    return %c0_i32, %c0_i32_0 : i32, i32
  }
  func.func @transform_6(%arg0: i32) -> (i32, i32) {
    %c0_i32 = arith.constant 0 : i32
    %c0_i32_0 = arith.constant 0 : i32
    %c0_i32_1 = arith.constant 0 : i32
    return %c0_i32, %c0_i32_0 : i32, i32
  }
  func.func @transform_7(%arg0: i32) -> (i32, i32) {
    %c0_i32 = arith.constant 0 : i32
    %c0_i32_0 = arith.constant 0 : i32
    %c0_i32_1 = arith.constant 0 : i32
    return %c0_i32, %c0_i32_0 : i32, i32
  }
  func.func @transform_8(%arg0: i32) -> (i32, i32) {
    %c0_i32 = arith.constant 0 : i32
    %c0_i32_0 = arith.constant 0 : i32
    %c0_i32_1 = arith.constant 0 : i32
    return %c0_i32, %c0_i32_0 : i32, i32
  }
  func.func @transform_9(%arg0: i32) -> (i32, i32) {
    %c0_i32 = arith.constant 0 : i32
    %c0_i32_0 = arith.constant 0 : i32
    %c0_i32_1 = arith.constant 0 : i32
    return %c0_i32, %c0_i32_0 : i32, i32
  }
  func.func @transform_10(%arg0: i32) -> (i32, i32) {
    %c0_i32 = arith.constant 0 : i32
    %c0_i32_0 = arith.constant 0 : i32
    %c0_i32_1 = arith.constant 0 : i32
    return %c0_i32, %c0_i32_0 : i32, i32
  }
  func.func @transform_11(%arg0: i32) -> (i32, i32) {
    %c0_i32 = arith.constant 0 : i32
    %c0_i32_0 = arith.constant 0 : i32
    %c0_i32_1 = arith.constant 0 : i32
    return %c0_i32, %c0_i32_0 : i32, i32
  }
  func.func @transform_12(%arg0: i32) -> (i32, i32) {
    %c0_i32 = arith.constant 0 : i32
    %c0_i32_0 = arith.constant 0 : i32
    %c0_i32_1 = arith.constant 0 : i32
    return %c0_i32, %c0_i32_0 : i32, i32
  }
  func.func @transform_13(%arg0: i32) -> (i32, i32, i32) {
    %c0_i32 = arith.constant 0 : i32
    %c0_i32_0 = arith.constant 0 : i32
    %c0_i32_1 = arith.constant 0 : i32
    %c0_i32_2 = arith.constant 0 : i32
    return %c0_i32, %c0_i32_0, %c0_i32_1 : i32, i32, i32
  }
  func.func @transform_14(%arg0: i32) -> (i32, i32) {
    %c0_i32 = arith.constant 0 : i32
    %c0_i32_0 = arith.constant 0 : i32
    %c0_i32_1 = arith.constant 0 : i32
    return %c0_i32, %c0_i32_0 : i32, i32
  }
  func.func @transform_15(%arg0: i32) -> (i32, i32) {
    %c0_i32 = arith.constant 0 : i32
    %c0_i32_0 = arith.constant 0 : i32
    %c0_i32_1 = arith.constant 0 : i32
    return %c0_i32, %c0_i32_0 : i32, i32
  }
  func.func @transform_16(%arg0: i32) -> (i32, i32) {
    %c0_i32 = arith.constant 0 : i32
    %c0_i32_0 = arith.constant 0 : i32
    %c0_i32_1 = arith.constant 0 : i32
    return %c0_i32, %c0_i32_0 : i32, i32
  }
}

</mosaic_0001>

<llo_original>
// kernel: tpu_custom_call.1
$region0: #{tpu_custom_call.1}
  #allocation0 [shape = 'u32[]', space=smem, size = 0x4, offset = 0x4, fixed_abs, tag = 'smem constant byte address 0x4 - core index']
  #allocation1 [shape = 'u32[72,128]{1,0:T(1,128)}', space=vmem, size = 0x9000, scoped, tag = 'internal scratch']
  %s0 = inlined_call_operand.vmem [shape: f32[64,24], index: 0, kind: input, shape index: {}]
  %s1 = inlined_call_operand.vmem [shape: f32[64,128], index: 1, kind: input, shape index: {}]
  %s2 = inlined_call_operand.vmem [shape: f32[24,128], index: 2, kind: input, shape index: {}]
  %s3 = inlined_call_operand.hbm [shape: f32[3,128], index: 3, kind: input, shape index: {}]
  %s4 = inlined_call_operand.vmem [shape: f32[128,128], index: 4, kind: input, shape index: {}]
  %s5 = inlined_call_operand.hbm [shape: f32[3,128], index: 5, kind: input, shape index: {}]
  %s6 = inlined_call_operand.hbm [shape: f32[24,64], index: 6, kind: input, shape index: {}]
  %s7 = inlined_call_operand.vmem [shape: f32[3,64], index: 7, kind: input, shape index: {}]
  %s8 = inlined_call_operand.vmem [shape: f32[64,64], index: 8, kind: input, shape index: {}]
  %s9 = inlined_call_operand.hbm [shape: f32[3,64], index: 9, kind: input, shape index: {}]
  %s10 = inlined_call_operand.hbm [shape: f32[64,64], index: 10, kind: input, shape index: {}]
  %s11 = inlined_call_operand.vmem [shape: f32[1,64], index: 11, kind: input, shape index: {}]
  %s12 = inlined_call_operand.vmem [shape: f32[64,384], index: 12, kind: input, shape index: {}]
  %s13 = inlined_call_operand.vmem [shape: f32[2,128,32], index: 13, kind: input, shape index: {}]
  %s14 = inlined_call_operand.vmem [shape: f32[128,32], index: 14, kind: input, shape index: {}]
  %s15 = inlined_call_operand.vmem [shape: f32[1,32], index: 15, kind: input, shape index: {}]
  %s16 = inlined_call_operand.vmem [shape: f32[64,32], index: 16, kind: output, shape index: {}]
  %s17 = sld [smem:[#allocation0]]
  $region94: #{tpu_custom_call.1} parent=0
    _
  %s19 = ssub.s32 1, %s17
  %s20 = scalar_select 0, %s19, %s17
  $region1: #{tpu_custom_call.1} parent=0
    #allocation2 [shape = 'u8[2048]{0}', space=vmem, size = 0x800, scoped, tag = 'input window, operand 3, single buffered']
    #allocation3 [shape = 's32[1]{0}', space=sflag, size = 0x4, scoped, tag = 'scoped memory for tpu_custom_call.1']
    #allocation4 [shape = 'u8[2048]{0}', space=vmem, size = 0x800, scoped, tag = 'input window, operand 5, single buffered']
    #allocation5 [shape = 's32[1]{0}', space=sflag, size = 0x4, scoped, tag = 'scoped memory for tpu_custom_call.1']
    #allocation6 [shape = 'u8[12288]{0}', space=vmem, size = 0x3000, scoped, tag = 'input window, operand 6, single buffered']
    #allocation7 [shape = 'u8[2048]{0}', space=vmem, size = 0x800, scoped, tag = 'input window, operand 9, single buffered']
    #allocation8 [shape = 's32[1]{0}', space=sflag, size = 0x4, scoped, tag = 'scoped memory for tpu_custom_call.1']
    #allocation9 [shape = 'u8[32768]{0}', space=vmem, size = 0x8000, scoped, tag = 'input window, operand 10, single buffered']
    %21 = vsyncpa [#allocation3], 0
    %22 = vsyncpa [#allocation5], 0
    %23 = vsyncpa [#allocation8], 0
    // Predicated region
    $region2: #{tpu_custom_call.1} parent=1 // pred_check
      _
    $region3: #{tpu_custom_call.1} parent=1 // pred_check_branch
      %25 = sbr.rel (0) target = $region5
    $region4: #{tpu_custom_call.1} parent=1 // pred_region
      _
    $region5: #{tpu_custom_call.1} parent=1 // pred_fallthru
      _
    // Predicated region
    $region6: #{tpu_custom_call.1} parent=1 // pred_check
      _
    $region7: #{tpu_custom_call.1} parent=1 // pred_check_branch
      %27 = sbr.rel (0) target = $region9
    $region8: #{tpu_custom_call.1} parent=1 // pred_region
      _
    $region9: #{tpu_custom_call.1} parent=1 // pred_fallthru
      _
    // Predicated region
    $region10: #{tpu_custom_call.1} parent=1 // pred_check
      _
    $region11: #{tpu_custom_call.1} parent=1 // pred_check_branch
      %29 = sbr.rel (0) target = $region13
    $region12: #{tpu_custom_call.1} parent=1 // pred_region
      _
    $region13: #{tpu_custom_call.1} parent=1 // pred_fallthru
      _
    // Predicated region
    $region14: #{tpu_custom_call.1} parent=1 // pred_check
      _
    $region15: #{tpu_custom_call.1} parent=1 // pred_check_branch
      %31 = sbr.rel (0) target = $region17
    $region16: #{tpu_custom_call.1} parent=1 // pred_region
      %33 = vsyncadd [#allocation3], 0
      %s35 = sshll.u32 %s3, 4
      %s36 = int_to_ptr.hbm [resolvable:$true] %s35
      %s37 = sshll.u32 [#allocation2], 4
      %s38 = int_to_ptr.vmem [resolvable:$true] %s37
      %40 = dma.hbm_to_vmem [thread:$0]  %s36, 64, %s38, [#allocation3]
    $region17: #{tpu_custom_call.1} parent=1 // pred_fallthru
      _
    // Predicated region
    $region18: #{tpu_custom_call.1} parent=1 // pred_check
      _
    $region19: #{tpu_custom_call.1} parent=1 // pred_check_branch
      %42 = sbr.rel (0) target = $region21
    $region20: #{tpu_custom_call.1} parent=1 // pred_region
      _
    $region21: #{tpu_custom_call.1} parent=1 // pred_fallthru
      _
    // Predicated region
    $region22: #{tpu_custom_call.1} parent=1 // pred_check
      _
    $region23: #{tpu_custom_call.1} parent=1 // pred_check_branch
      %44 = sbr.rel (0) target = $region25
    $region24: #{tpu_custom_call.1} parent=1 // pred_region
      %46 = vsyncadd [#allocation5], 0
      %s48 = sshll.u32 %s5, 4
      %s49 = int_to_ptr.hbm [resolvable:$true] %s48
      %s50 = sshll.u32 [#allocation4], 4
      %s51 = int_to_ptr.vmem [resolvable:$true] %s50
      %53 = dma.hbm_to_vmem [thread:$0]  %s49, 64, %s51, [#allocation5]
    $region25: #{tpu_custom_call.1} parent=1 // pred_fallthru
      _
    // Predicated region
    $region26: #{tpu_custom_call.1} parent=1 // pred_check
      _
    $region27: #{tpu_custom_call.1} parent=1 // pred_check_branch
      %55 = sbr.rel (0) target = $region29
    $region28: #{tpu_custom_call.1} parent=1 // pred_region
      %57 = vsyncadd [#allocation5], 0
      %s58 = sshll.u32 %s6, 4
      %s59 = int_to_ptr.hbm [resolvable:$true] %s58
      %s60 = sshll.u32 [#allocation6], 4
      %s61 = int_to_ptr.vmem [resolvable:$true] %s60
      %66 = dma.hbm_to_vmem [thread:$0]  %s59, 384, %s61, [#allocation5], 128, 128, 8
    $region29: #{tpu_custom_call.1} parent=1 // pred_fallthru
      _
    // Predicated region
    $region30: #{tpu_custom_call.1} parent=1 // pred_check
      _
    $region31: #{tpu_custom_call.1} parent=1 // pred_check_branch
      %68 = sbr.rel (0) target = $region33
    $region32: #{tpu_custom_call.1} parent=1 // pred_region
      _
    $region33: #{tpu_custom_call.1} parent=1 // pred_fallthru
      _
    // Predicated region
    $region34: #{tpu_custom_call.1} parent=1 // pred_check
      _
    $region35: #{tpu_custom_call.1} parent=1 // pred_check_branch
      %70 = sbr.rel (0) target = $region37
    $region36: #{tpu_custom_call.1} parent=1 // pred_region
      _
    $region37: #{tpu_custom_call.1} parent=1 // pred_fallthru
      _
    // Predicated region
    $region38: #{tpu_custom_call.1} parent=1 // pred_check
      _
    $region39: #{tpu_custom_call.1} parent=1 // pred_check_branch
      %72 = sbr.rel (0) target = $region41
    $region40: #{tpu_custom_call.1} parent=1 // pred_region
      %74 = vsyncadd [#allocation8], 0
      %s76 = sshll.u32 %s9, 4
      %s77 = int_to_ptr.hbm [resolvable:$true] %s76
      %s78 = sshll.u32 [#allocation7], 4
      %s79 = int_to_ptr.vmem [resolvable:$true] %s78
      %81 = dma.hbm_to_vmem [thread:$0]  %s77, 64, %s79, [#allocation8]
    $region41: #{tpu_custom_call.1} parent=1 // pred_fallthru
      _
    // Predicated region
    $region42: #{tpu_custom_call.1} parent=1 // pred_check
      _
    $region43: #{tpu_custom_call.1} parent=1 // pred_check_branch
      %83 = sbr.rel (0) target = $region45
    $region44: #{tpu_custom_call.1} parent=1 // pred_region
      %85 = vsyncadd [#allocation8], 0
      %s86 = sshll.u32 %s10, 4
      %s87 = int_to_ptr.hbm [resolvable:$true] %s86
      %s88 = sshll.u32 [#allocation9], 4
      %s89 = int_to_ptr.vmem [resolvable:$true] %s88
      %94 = dma.hbm_to_vmem [thread:$0]  %s87, 1024, %s89, [#allocation8], 128, 128, 8
    $region45: #{tpu_custom_call.1} parent=1 // pred_fallthru
      _
    // Predicated region
    $region46: #{tpu_custom_call.1} parent=1 // pred_check
      _
    $region47: #{tpu_custom_call.1} parent=1 // pred_check_branch
      %96 = sbr.rel (0) target = $region49
    $region48: #{tpu_custom_call.1} parent=1 // pred_region
      _
    $region49: #{tpu_custom_call.1} parent=1 // pred_fallthru
      _
    // Predicated region
    $region50: #{tpu_custom_call.1} parent=1 // pred_check
      _
    $region51: #{tpu_custom_call.1} parent=1 // pred_check_branch
      %98 = sbr.rel (0) target = $region53
    $region52: #{tpu_custom_call.1} parent=1 // pred_region
      _
    $region53: #{tpu_custom_call.1} parent=1 // pred_fallthru
      _
    // Predicated region
    $region54: #{tpu_custom_call.1} parent=1 // pred_check
      _
    $region55: #{tpu_custom_call.1} parent=1 // pred_check_branch
      %100 = sbr.rel (0) target = $region57
    $region56: #{tpu_custom_call.1} parent=1 // pred_region
      _
    $region57: #{tpu_custom_call.1} parent=1 // pred_fallthru
      _
    // Predicated region
    $region58: #{tpu_custom_call.1} parent=1 // pred_check
      _
    $region59: #{tpu_custom_call.1} parent=1 // pred_check_branch
      %102 = sbr.rel (0) target = $region61
    $region60: #{tpu_custom_call.1} parent=1 // pred_region
      _
    $region61: #{tpu_custom_call.1} parent=1 // pred_fallthru
      _
    // Predicated region
    $region62: #{tpu_custom_call.1} parent=1 // pred_check
      _
    $region63: #{tpu_custom_call.1} parent=1 // pred_check_branch
      %104 = sbr.rel (0) target = $region65
    $region64: #{tpu_custom_call.1} parent=1 // pred_region
      _
    $region65: #{tpu_custom_call.1} parent=1 // pred_fallthru
      _
    // Predicated region
    $region66: #{tpu_custom_call.1} parent=1 // pred_check
      _
    $region67: #{tpu_custom_call.1} parent=1 // pred_check_branch
      %106 = sbr.rel (0) target = $region69
    $region68: #{tpu_custom_call.1} parent=1 // pred_region
      %108 = dma.done [#allocation3], 64
    $region69: #{tpu_custom_call.1} parent=1 // pred_fallthru
      _
    // Predicated region
    $region70: #{tpu_custom_call.1} parent=1 // pred_check
      _
    $region71: #{tpu_custom_call.1} parent=1 // pred_check_branch
      %110 = sbr.rel (0) target = $region73
    $region72: #{tpu_custom_call.1} parent=1 // pred_region
      %112 = dma.done [#allocation5], 64
    $region73: #{tpu_custom_call.1} parent=1 // pred_fallthru
      _
    // Predicated region
    $region74: #{tpu_custom_call.1} parent=1 // pred_check
      _
    $region75: #{tpu_custom_call.1} parent=1 // pred_check_branch
      %114 = sbr.rel (0) target = $region77
    $region76: #{tpu_custom_call.1} parent=1 // pred_region
      %116 = dma.done [#allocation5], 384
    $region77: #{tpu_custom_call.1} parent=1 // pred_fallthru
      _
    // Predicated region
    $region78: #{tpu_custom_call.1} parent=1 // pred_check
      _
    $region79: #{tpu_custom_call.1} parent=1 // pred_check_branch
      %118 = sbr.rel (0) target = $region81
    $region80: #{tpu_custom_call.1} parent=1 // pred_region
      %120 = dma.done [#allocation8], 64
    $region81: #{tpu_custom_call.1} parent=1 // pred_fallthru
      _
    // Predicated region
    $region82: #{tpu_custom_call.1} parent=1 // pred_check
      _
    $region83: #{tpu_custom_call.1} parent=1 // pred_check_branch
      %122 = sbr.rel (0) target = $region85
    $region84: #{tpu_custom_call.1} parent=1 // pred_region
      %124 = dma.done [#allocation8], 1024
    $region85: #{tpu_custom_call.1} parent=1 // pred_fallthru
      _
    %v125 = vld [vmem:[%s0] sm:$0xff]
    %v126 = vld [vmem:[%s0 + $0x8] sm:$0xff]
    %v127 = vld [vmem:[%s0 + $0x10] sm:$0xff]
    %v128 = vld [vmem:[%s0 + $0x18] sm:$0xff]
    %v129 = vld [vmem:[%s0 + $0x20] sm:$0xff]
    %v130 = vld [vmem:[%s0 + $0x28] sm:$0xff]
    %v131 = vld [vmem:[%s0 + $0x30] sm:$0xff]
    %v132 = vld [vmem:[%s0 + $0x38] sm:$0xff]
    %v133 = vld [vmem:[%s2] sm:$0xff]
    %v134 = vld [vmem:[%s2 + $0x8] sm:$0xff]
    %v135 = vld [vmem:[%s2 + $0x10] sm:$0xff]
    %vm136 = vcmask 195584
    %v138 = vsel %vm136, %v125, 0
    %v141 = vsel %vm136, %v126, 0
    %v144 = vsel %vm136, %v127, 0
    %v147 = vsel %vm136, %v128, 0
    %v150 = vsel %vm136, %v129, 0
    %v153 = vsel %vm136, %v130, 0
    %v156 = vsel %vm136, %v131, 0
    %v159 = vsel %vm136, %v132, 0
    %161 = vmatpush.msra.mxu0 0.0
    %162 = vmatpush.msra.mxu0 0.0
    %163 = vmatpush.msra.mxu0 0.0
    %164 = vmatpush.msra.mxu0 0.0
    %165 = vmatpush.msra.mxu0 0.0
    %166 = vmatpush.msra.mxu0 0.0
    %167 = vmatpush.msra.mxu0 0.0
    %168 = vmatpush.msra.mxu0 0.0
    %169 = vmatpush.msra.mxu0 0.0
    %170 = vmatpush.msra.mxu0 0.0
    %171 = vmatpush.msra.mxu0 0.0
    %172 = vmatpush.msra.mxu0 0.0
    %173 = vmatpush.msra.mxu0 0.0
    %174 = vmatpush.msra.mxu0 %v135
    %175 = vmatpush.msra.mxu0 %v134
    %176 = vmatpush.msra.mxu0 %v133
    %177 = vmatmul.f32.gmra.mxu0 %v138
    %v178 = vpop.f32.mrf.mxu0
    %v179 = vadd.f32 0.0, %v178
    %180 = vmatmul.f32.gmra.mxu0 %v141
    %v181 = vpop.f32.mrf.mxu0
    %v182 = vadd.f32 0.0, %v181
    %183 = vmatmul.f32.gmra.mxu0 %v144
    %v184 = vpop.f32.mrf.mxu0
    %v185 = vadd.f32 0.0, %v184
    %186 = vmatmul.f32.gmra.mxu0 %v147
    %v187 = vpop.f32.mrf.mxu0
    %v188 = vadd.f32 0.0, %v187
    %189 = vmatmul.f32.gmra.mxu0 %v150
    %v190 = vpop.f32.mrf.mxu0
    %v191 = vadd.f32 0.0, %v190
    %192 = vmatmul.f32.gmra.mxu0 %v153
    %v193 = vpop.f32.mrf.mxu0
    %v194 = vadd.f32 0.0, %v193
    %195 = vmatmul.f32.gmra.mxu0 %v156
    %v196 = vpop.f32.mrf.mxu0
    %v197 = vadd.f32 0.0, %v196
    %198 = vmatmul.f32.gmra.mxu0 %v159
    %v199 = vpop.f32.mrf.mxu0
    %v200 = vadd.f32 0.0, %v199
    %201 = vdwg.mxu0
    %v202 = vld [vmem:[#allocation2] sm:$0x1]
    %v203 = vperm.slane %v202, 0
    %vm204 = vcmp.ge.f32.partialorder %v179, %v203
    %vm205 = vcmp.ge.f32.partialorder %v182, %v203
    %vm206 = vcmp.ge.f32.partialorder %v185, %v203
    %vm207 = vcmp.ge.f32.partialorder %v188, %v203
    %vm208 = vcmp.ge.f32.partialorder %v191, %v203
    %vm209 = vcmp.ge.f32.partialorder %v194, %v203
    %vm210 = vcmp.ge.f32.partialorder %v197, %v203
    %vm211 = vcmp.ge.f32.partialorder %v200, %v203
    %v212 = vld [vmem:[#allocation2 + $0x1] sm:$0x1]
    %v213 = vld [vmem:[#allocation2 + $0x2] sm:$0x1]
    %v214 = vperm.slane %v212, 0
    %v215 = vperm.slane %v213, 0
    %v216 = vsel %vm204, %v214, %v215
    %v217 = vsel %vm205, %v214, %v215
    %v218 = vsel %vm206, %v214, %v215
    %v219 = vsel %vm207, %v214, %v215
    %v220 = vsel %vm208, %v214, %v215
    %v221 = vsel %vm209, %v214, %v215
    %v222 = vsel %vm210, %v214, %v215
    %v223 = vsel %vm211, %v214, %v215
    %v224 = vld [vmem:[%s4] sm:$0xff]
    %v225 = vld [vmem:[%s4 + $0x8] sm:$0xff]
    %v226 = vld [vmem:[%s4 + $0x10] sm:$0xff]
    %v227 = vld [vmem:[%s4 + $0x18] sm:$0xff]
    %v228 = vld [vmem:[%s4 + $0x20] sm:$0xff]
    %v229 = vld [vmem:[%s4 + $0x28] sm:$0xff]
    %v230 = vld [vmem:[%s4 + $0x30] sm:$0xff]
    %v231 = vld [vmem:[%s4 + $0x38] sm:$0xff]
    %v232 = vld [vmem:[%s4 + $0x40] sm:$0xff]
    %v233 = vld [vmem:[%s4 + $0x48] sm:$0xff]
    %v234 = vld [vmem:[%s4 + $0x50] sm:$0xff]
    %v235 = vld [vmem:[%s4 + $0x58] sm:$0xff]
    %v236 = vld [vmem:[%s4 + $0x60] sm:$0xff]
    %v237 = vld [vmem:[%s4 + $0x68] sm:$0xff]
    %v238 = vld [vmem:[%s4 + $0x70] sm:$0xff]
    %v239 = vld [vmem:[%s4 + $0x78] sm:$0xff]
    %240 = vmatpush.msra.mxu0 %v239
    %241 = vmatpush.msra.mxu0 %v238
    %242 = vmatpush.msra.mxu0 %v237
    %243 = vmatpush.msra.mxu0 %v236
    %244 = vmatpush.msra.mxu0 %v235
    %245 = vmatpush.msra.mxu0 %v234
    %246 = vmatpush.msra.mxu0 %v233
    %247 = vmatpush.msra.mxu0 %v232
    %248 = vmatpush.msra.mxu0 %v231
    %249 = vmatpush.msra.mxu0 %v230
    %250 = vmatpush.msra.mxu0 %v229
    %251 = vmatpush.msra.mxu0 %v228
    %252 = vmatpush.msra.mxu0 %v227
    %253 = vmatpush.msra.mxu0 %v226
    %254 = vmatpush.msra.mxu0 %v225
    %255 = vmatpush.msra.mxu0 %v224
    %256 = vmatmul.f32.gmra.mxu0 %v216
    %v257 = vpop.f32.mrf.mxu0
    %v258 = vadd.f32 0.0, %v257
    %259 = vmatmul.f32.gmra.mxu0 %v217
    %v260 = vpop.f32.mrf.mxu0
    %v261 = vadd.f32 0.0, %v260
    %262 = vmatmul.f32.gmra.mxu0 %v218
    %v263 = vpop.f32.mrf.mxu0
    %v264 = vadd.f32 0.0, %v263
    %265 = vmatmul.f32.gmra.mxu0 %v219
    %v266 = vpop.f32.mrf.mxu0
    %v267 = vadd.f32 0.0, %v266
    %268 = vmatmul.f32.gmra.mxu0 %v220
    %v269 = vpop.f32.mrf.mxu0
    %v270 = vadd.f32 0.0, %v269
    %271 = vmatmul.f32.gmra.mxu0 %v221
    %v272 = vpop.f32.mrf.mxu0
    %v273 = vadd.f32 0.0, %v272
    %274 = vmatmul.f32.gmra.mxu0 %v222
    %v275 = vpop.f32.mrf.mxu0
    %v276 = vadd.f32 0.0, %v275
    %277 = vmatmul.f32.gmra.mxu0 %v223
    %v278 = vpop.f32.mrf.mxu0
    %v279 = vadd.f32 0.0, %v278
    %280 = vdwg.mxu0
    %v281 = vld [vmem:[#allocation4] sm:$0x1]
    %v282 = vperm.slane %v281, 0
    %vm283 = vcmp.ge.f32.partialorder %v258, %v282
    %vm284 = vcmp.ge.f32.partialorder %v261, %v282
    %vm285 = vcmp.ge.f32.partialorder %v264, %v282
    %vm286 = vcmp.ge.f32.partialorder %v267, %v282
    %vm287 = vcmp.ge.f32.partialorder %v270, %v282
    %vm288 = vcmp.ge.f32.partialorder %v273, %v282
    %vm289 = vcmp.ge.f32.partialorder %v276, %v282
    %vm290 = vcmp.ge.f32.partialorder %v279, %v282
    %v291 = vld [vmem:[#allocation4 + $0x1] sm:$0x1]
    %v292 = vld [vmem:[#allocation4 + $0x2] sm:$0x1]
    %v293 = vperm.slane %v291, 0
    %v294 = vperm.slane %v292, 0
    %v295 = vsel %vm283, %v293, %v294
    %v296 = vsel %vm284, %v293, %v294
    %v297 = vsel %vm285, %v293, %v294
    %v298 = vsel %vm286, %v293, %v294
    %v299 = vsel %vm287, %v293, %v294
    %v300 = vsel %vm288, %v293, %v294
    %v301 = vsel %vm289, %v293, %v294
    %v302 = vsel %vm290, %v293, %v294
    %v303 = vld [vmem:[#allocation6] sm:$0xff]
    %v304 = vld [vmem:[#allocation6 + $0x8] sm:$0xff]
    %v305 = vld [vmem:[#allocation6 + $0x10] sm:$0xff]
    %306 = vmatpush.msra.mxu0 0.0
    %307 = vmatpush.msra.mxu0 0.0
    %308 = vmatpush.msra.mxu0 0.0
    %309 = vmatpush.msra.mxu0 0.0
    %310 = vmatpush.msra.mxu0 0.0
    %311 = vmatpush.msra.mxu0 0.0
    %312 = vmatpush.msra.mxu0 0.0
    %313 = vmatpush.msra.mxu0 0.0
    %314 = vmatpush.msra.mxu0 0.0
    %315 = vmatpush.msra.mxu0 0.0
    %316 = vmatpush.msra.mxu0 0.0
    %317 = vmatpush.msra.mxu0 0.0
    %318 = vmatpush.msra.mxu0 0.0
    %319 = vmatpush.msra.mxu0 %v305
    %320 = vmatpush.msra.mxu0 %v304
    %321 = vmatpush.msra.mxu0 %v303
    %322 = vmatmul.f32.gmra.mxu0 %v138
    %v323 = vpop.f32.mrf.mxu0
    %v324 = vadd.f32 0.0, %v323
    %325 = vmatmul.f32.gmra.mxu0 %v141
    %v326 = vpop.f32.mrf.mxu0
    %v327 = vadd.f32 0.0, %v326
    %328 = vmatmul.f32.gmra.mxu0 %v144
    %v329 = vpop.f32.mrf.mxu0
    %v330 = vadd.f32 0.0, %v329
    %331 = vmatmul.f32.gmra.mxu0 %v147
    %v332 = vpop.f32.mrf.mxu0
    %v333 = vadd.f32 0.0, %v332
    %334 = vmatmul.f32.gmra.mxu0 %v150
    %v335 = vpop.f32.mrf.mxu0
    %v336 = vadd.f32 0.0, %v335
    %337 = vmatmul.f32.gmra.mxu0 %v153
    %v338 = vpop.f32.mrf.mxu0
    %v339 = vadd.f32 0.0, %v338
    %340 = vmatmul.f32.gmra.mxu0 %v156
    %v341 = vpop.f32.mrf.mxu0
    %v342 = vadd.f32 0.0, %v341
    %343 = vmatmul.f32.gmra.mxu0 %v159
    %v344 = vpop.f32.mrf.mxu0
    %v345 = vadd.f32 0.0, %v344
    %346 = vdwg.mxu0
    %v347 = vld [vmem:[%s7] sm:$0x1]
    %v348 = vperm.slane %v347, 0
    %vm349 = vcmp.ge.f32.partialorder %v324, %v348
    %vm350 = vcmp.ge.f32.partialorder %v327, %v348
    %vm351 = vcmp.ge.f32.partialorder %v330, %v348
    %vm352 = vcmp.ge.f32.partialorder %v333, %v348
    %vm353 = vcmp.ge.f32.partialorder %v336, %v348
    %vm354 = vcmp.ge.f32.partialorder %v339, %v348
    %vm355 = vcmp.ge.f32.partialorder %v342, %v348
    %vm356 = vcmp.ge.f32.partialorder %v345, %v348
    %v357 = vld [vmem:[%s7 + $0x1] sm:$0x1]
    %v358 = vld [vmem:[%s7 + $0x2] sm:$0x1]
    %v359 = vperm.slane %v357, 0
    %v360 = vperm.slane %v358, 0
    %v361 = vsel %vm349, %v359, %v360
    %v362 = vsel %vm350, %v359, %v360
    %v363 = vsel %vm351, %v359, %v360
    %v364 = vsel %vm352, %v359, %v360
    %v365 = vsel %vm353, %v359, %v360
    %v366 = vsel %vm354, %v359, %v360
    %v367 = vsel %vm355, %v359, %v360
    %v368 = vsel %vm356, %v359, %v360
    %v369 = vld [vmem:[%s8] sm:$0xff]
    %v370 = vld [vmem:[%s8 + $0x8] sm:$0xff]
    %v371 = vld [vmem:[%s8 + $0x10] sm:$0xff]
    %v372 = vld [vmem:[%s8 + $0x18] sm:$0xff]
    %v373 = vld [vmem:[%s8 + $0x20] sm:$0xff]
    %v374 = vld [vmem:[%s8 + $0x28] sm:$0xff]
    %v375 = vld [vmem:[%s8 + $0x30] sm:$0xff]
    %v376 = vld [vmem:[%s8 + $0x38] sm:$0xff]
    %vm377 = vcmask 523264
    %v379 = vsel %vm377, %v361, 0
    %v382 = vsel %vm377, %v362, 0
    %v385 = vsel %vm377, %v363, 0
    %v388 = vsel %vm377, %v364, 0
    %v391 = vsel %vm377, %v365, 0
    %v394 = vsel %vm377, %v366, 0
    %v397 = vsel %vm377, %v367, 0
    %v400 = vsel %vm377, %v368, 0
    %402 = vmatpush.msra.mxu0 0.0
    %403 = vmatpush.msra.mxu0 0.0
    %404 = vmatpush.msra.mxu0 0.0
    %405 = vmatpush.msra.mxu0 0.0
    %406 = vmatpush.msra.mxu0 0.0
    %407 = vmatpush.msra.mxu0 0.0
    %408 = vmatpush.msra.mxu0 0.0
    %409 = vmatpush.msra.mxu0 0.0
    %410 = vmatpush.msra.mxu0 %v376
    %411 = vmatpush.msra.mxu0 %v375
    %412 = vmatpush.msra.mxu0 %v374
    %413 = vmatpush.msra.mxu0 %v373
    %414 = vmatpush.msra.mxu0 %v372
    %415 = vmatpush.msra.mxu0 %v371
    %416 = vmatpush.msra.mxu0 %v370
    %417 = vmatpush.msra.mxu0 %v369
    %418 = vmatmul.f32.gmra.mxu0 %v379
    %v419 = vpop.f32.mrf.mxu0
    %v420 = vadd.f32 0.0, %v419
    %421 = vmatmul.f32.gmra.mxu0 %v382
    %v422 = vpop.f32.mrf.mxu0
    %v423 = vadd.f32 0.0, %v422
    %424 = vmatmul.f32.gmra.mxu0 %v385
    %v425 = vpop.f32.mrf.mxu0
    %v426 = vadd.f32 0.0, %v425
    %427 = vmatmul.f32.gmra.mxu0 %v388
    %v428 = vpop.f32.mrf.mxu0
    %v429 = vadd.f32 0.0, %v428
    %430 = vmatmul.f32.gmra.mxu0 %v391
    %v431 = vpop.f32.mrf.mxu0
    %v432 = vadd.f32 0.0, %v431
    %433 = vmatmul.f32.gmra.mxu0 %v394
    %v434 = vpop.f32.mrf.mxu0
    %v435 = vadd.f32 0.0, %v434
    %436 = vmatmul.f32.gmra.mxu0 %v397
    %v437 = vpop.f32.mrf.mxu0
    %v438 = vadd.f32 0.0, %v437
    %439 = vmatmul.f32.gmra.mxu0 %v400
    %v440 = vpop.f32.mrf.mxu0
    %v441 = vadd.f32 0.0, %v440
    %442 = vdwg.mxu0
    %v443 = vld [vmem:[#allocation7] sm:$0x1]
    %v444 = vperm.slane %v443, 0
    %vm445 = vcmp.ge.f32.partialorder %v420, %v444
    %vm446 = vcmp.ge.f32.partialorder %v423, %v444
    %vm447 = vcmp.ge.f32.partialorder %v426, %v444
    %vm448 = vcmp.ge.f32.partialorder %v429, %v444
    %vm449 = vcmp.ge.f32.partialorder %v432, %v444
    %vm450 = vcmp.ge.f32.partialorder %v435, %v444
    %vm451 = vcmp.ge.f32.partialorder %v438, %v444
    %vm452 = vcmp.ge.f32.partialorder %v441, %v444
    %v453 = vld [vmem:[#allocation7 + $0x1] sm:$0x1]
    %v454 = vld [vmem:[#allocation7 + $0x2] sm:$0x1]
    %v455 = vperm.slane %v453, 0
    %v456 = vperm.slane %v454, 0
    %v457 = vsel %vm445, %v455, %v456
    %v458 = vsel %vm446, %v455, %v456
    %v459 = vsel %vm447, %v455, %v456
    %v460 = vsel %vm448, %v455, %v456
    %v461 = vsel %vm449, %v455, %v456
    %v462 = vsel %vm450, %v455, %v456
    %v463 = vsel %vm451, %v455, %v456
    %v464 = vsel %vm452, %v455, %v456
    %v465 = vld [vmem:[#allocation9] sm:$0xff]
    %v466 = vld [vmem:[#allocation9 + $0x8] sm:$0xff]
    %v467 = vld [vmem:[#allocation9 + $0x10] sm:$0xff]
    %v468 = vld [vmem:[#allocation9 + $0x18] sm:$0xff]
    %v469 = vld [vmem:[#allocation9 + $0x20] sm:$0xff]
    %v470 = vld [vmem:[#allocation9 + $0x28] sm:$0xff]
    %v471 = vld [vmem:[#allocation9 + $0x30] sm:$0xff]
    %v472 = vld [vmem:[#allocation9 + $0x38] sm:$0xff]
    %v473 = vld [vmem:[%s11] sm:$0x1]
    %v475 = vperm.slane %v473, 0
    %v478 = vsel %vm377, %v457, 0
    %v481 = vsel %vm377, %v458, 0
    %v484 = vsel %vm377, %v459, 0
    %v487 = vsel %vm377, %v460, 0
    %v490 = vsel %vm377, %v461, 0
    %v493 = vsel %vm377, %v462, 0
    %v496 = vsel %vm377, %v463, 0
    %v499 = vsel %vm377, %v464, 0
    %501 = vmatpush.msra.mxu0 0.0
    %502 = vmatpush.msra.mxu0 0.0
    %503 = vmatpush.msra.mxu0 0.0
    %504 = vmatpush.msra.mxu0 0.0
    %505 = vmatpush.msra.mxu0 0.0
    %506 = vmatpush.msra.mxu0 0.0
    %507 = vmatpush.msra.mxu0 0.0
    %508 = vmatpush.msra.mxu0 0.0
    %509 = vmatpush.msra.mxu0 %v472
    %510 = vmatpush.msra.mxu0 %v471
    %511 = vmatpush.msra.mxu0 %v470
    %512 = vmatpush.msra.mxu0 %v469
    %513 = vmatpush.msra.mxu0 %v468
    %514 = vmatpush.msra.mxu0 %v467
    %515 = vmatpush.msra.mxu0 %v466
    %516 = vmatpush.msra.mxu0 %v465
    %517 = vmatmul.f32.gmra.mxu0 %v478
    %v518 = vpop.f32.mrf.mxu0
    %v519 = vadd.f32 %v475, %v518
    %520 = vmatmul.f32.gmra.mxu0 %v481
    %v521 = vpop.f32.mrf.mxu0
    %v522 = vadd.f32 %v475, %v521
    %523 = vmatmul.f32.gmra.mxu0 %v484
    %v524 = vpop.f32.mrf.mxu0
    %v525 = vadd.f32 %v475, %v524
    %526 = vmatmul.f32.gmra.mxu0 %v487
    %v527 = vpop.f32.mrf.mxu0
    %v528 = vadd.f32 %v475, %v527
    %529 = vmatmul.f32.gmra.mxu0 %v490
    %v530 = vpop.f32.mrf.mxu0
    %v531 = vadd.f32 %v475, %v530
    %532 = vmatmul.f32.gmra.mxu0 %v493
    %v533 = vpop.f32.mrf.mxu0
    %v534 = vadd.f32 %v475, %v533
    %535 = vmatmul.f32.gmra.mxu0 %v496
    %v536 = vpop.f32.mrf.mxu0
    %v537 = vadd.f32 %v475, %v536
    %538 = vmatmul.f32.gmra.mxu0 %v499
    %v539 = vpop.f32.mrf.mxu0
    %v540 = vadd.f32 %v475, %v539
    %541 = vdwg.mxu0
    %v542 = vld [vmem:[%s12] sm:$0xff]
    %v543 = vld [vmem:[%s12 + $0x8] sm:$0xff]
    %v544 = vld [vmem:[%s12 + $0x10] sm:$0xff]
    %v545 = vld [vmem:[%s12 + $0x18] sm:$0xff]
    %v546 = vld [vmem:[%s12 + $0x20] sm:$0xff]
    %v547 = vld [vmem:[%s12 + $0x28] sm:$0xff]
    %v548 = vld [vmem:[%s12 + $0x30] sm:$0xff]
    %v549 = vld [vmem:[%s12 + $0x38] sm:$0xff]
    %v550 = vld [vmem:[%s12 + $0x40] sm:$0xff]
    %v551 = vld [vmem:[%s12 + $0x48] sm:$0xff]
    %v552 = vld [vmem:[%s12 + $0x50] sm:$0xff]
    %v553 = vld [vmem:[%s12 + $0x58] sm:$0xff]
    %v554 = vld [vmem:[%s12 + $0x60] sm:$0xff]
    %v555 = vld [vmem:[%s12 + $0x68] sm:$0xff]
    %v556 = vld [vmem:[%s12 + $0x70] sm:$0xff]
    %v557 = vld [vmem:[%s12 + $0x78] sm:$0xff]
    %v558 = vld [vmem:[%s12 + $0x80] sm:$0xff]
    %v559 = vld [vmem:[%s12 + $0x88] sm:$0xff]
    %v560 = vld [vmem:[%s12 + $0x90] sm:$0xff]
    %v561 = vld [vmem:[%s12 + $0x98] sm:$0xff]
    %v562 = vld [vmem:[%s12 + $0xa0] sm:$0xff]
    %v563 = vld [vmem:[%s12 + $0xa8] sm:$0xff]
    %v564 = vld [vmem:[%s12 + $0xb0] sm:$0xff]
    %v565 = vld [vmem:[%s12 + $0xb8] sm:$0xff]
    %v567 = vsel %vm377, %v519, 0
    %v570 = vsel %vm377, %v522, 0
    %v573 = vsel %vm377, %v525, 0
    %v576 = vsel %vm377, %v528, 0
    %v579 = vsel %vm377, %v531, 0
    %v582 = vsel %vm377, %v534, 0
    %v585 = vsel %vm377, %v537, 0
    %v588 = vsel %vm377, %v540, 0
    %590 = vmatpush.msra.mxu0 0.0
    %591 = vmatpush.msra.mxu0 0.0
    %592 = vmatpush.msra.mxu0 0.0
    %593 = vmatpush.msra.mxu0 0.0
    %594 = vmatpush.msra.mxu0 0.0
    %595 = vmatpush.msra.mxu0 0.0
    %596 = vmatpush.msra.mxu0 0.0
    %597 = vmatpush.msra.mxu0 0.0
    %598 = vmatpush.msra.mxu0 %v563
    %599 = vmatpush.msra.mxu0 %v560
    %600 = vmatpush.msra.mxu0 %v557
    %601 = vmatpush.msra.mxu0 %v554
    %602 = vmatpush.msra.mxu0 %v551
    %603 = vmatpush.msra.mxu0 %v548
    %604 = vmatpush.msra.mxu0 %v545
    %605 = vmatpush.msra.mxu0 %v542
    %606 = vmatmul.f32.gmra.mxu0 %v567
    %v607 = vpop.f32.mrf.mxu0
    %v608 = vadd.f32 0.0, %v607
    %609 = vmatmul.f32.gmra.mxu0 %v570
    %v610 = vpop.f32.mrf.mxu0
    %v611 = vadd.f32 0.0, %v610
    %612 = vmatmul.f32.gmra.mxu0 %v573
    %v613 = vpop.f32.mrf.mxu0
    %v614 = vadd.f32 0.0, %v613
    %615 = vmatmul.f32.gmra.mxu0 %v576
    %v616 = vpop.f32.mrf.mxu0
    %v617 = vadd.f32 0.0, %v616
    %618 = vmatmul.f32.gmra.mxu0 %v579
    %v619 = vpop.f32.mrf.mxu0
    %v620 = vadd.f32 0.0, %v619
    %621 = vmatmul.f32.gmra.mxu0 %v582
    %v622 = vpop.f32.mrf.mxu0
    %v623 = vadd.f32 0.0, %v622
    %624 = vmatmul.f32.gmra.mxu0 %v585
    %v625 = vpop.f32.mrf.mxu0
    %v626 = vadd.f32 0.0, %v625
    %627 = vmatmul.f32.gmra.mxu0 %v588
    %v628 = vpop.f32.mrf.mxu0
    %v629 = vadd.f32 0.0, %v628
    %630 = vdwg.mxu0
    %631 = vmatpush.msra.mxu0 0.0
    %632 = vmatpush.msra.mxu0 0.0
    %633 = vmatpush.msra.mxu0 0.0
    %634 = vmatpush.msra.mxu0 0.0
    %635 = vmatpush.msra.mxu0 0.0
    %636 = vmatpush.msra.mxu0 0.0
    %637 = vmatpush.msra.mxu0 0.0
    %638 = vmatpush.msra.mxu0 0.0
    %639 = vmatpush.msra.mxu0 %v564
    %640 = vmatpush.msra.mxu0 %v561
    %641 = vmatpush.msra.mxu0 %v558
    %642 = vmatpush.msra.mxu0 %v555
    %643 = vmatpush.msra.mxu0 %v552
    %644 = vmatpush.msra.mxu0 %v549
    %645 = vmatpush.msra.mxu0 %v546
    %646 = vmatpush.msra.mxu0 %v543
    %647 = vmatmul.f32.gmra.mxu0 %v567
    %v648 = vpop.f32.mrf.mxu0
    %v649 = vadd.f32 0.0, %v648
    %650 = vmatmul.f32.gmra.mxu0 %v570
    %v651 = vpop.f32.mrf.mxu0
    %v652 = vadd.f32 0.0, %v651
    %653 = vmatmul.f32.gmra.mxu0 %v573
    %v654 = vpop.f32.mrf.mxu0
    %v655 = vadd.f32 0.0, %v654
    %656 = vmatmul.f32.gmra.mxu0 %v576
    %v657 = vpop.f32.mrf.mxu0
    %v658 = vadd.f32 0.0, %v657
    %659 = vmatmul.f32.gmra.mxu0 %v579
    %v660 = vpop.f32.mrf.mxu0
    %v661 = vadd.f32 0.0, %v660
    %662 = vmatmul.f32.gmra.mxu0 %v582
    %v663 = vpop.f32.mrf.mxu0
    %v664 = vadd.f32 0.0, %v663
    %665 = vmatmul.f32.gmra.mxu0 %v585
    %v666 = vpop.f32.mrf.mxu0
    %v667 = vadd.f32 0.0, %v666
    %668 = vmatmul.f32.gmra.mxu0 %v588
    %v669 = vpop.f32.mrf.mxu0
    %v670 = vadd.f32 0.0, %v669
    %671 = vdwg.mxu0
    %672 = vmatpush.msra.mxu0 0.0
    %673 = vmatpush.msra.mxu0 0.0
    %674 = vmatpush.msra.mxu0 0.0
    %675 = vmatpush.msra.mxu0 0.0
    %676 = vmatpush.msra.mxu0 0.0
    %677 = vmatpush.msra.mxu0 0.0
    %678 = vmatpush.msra.mxu0 0.0
    %679 = vmatpush.msra.mxu0 0.0
    %680 = vmatpush.msra.mxu0 %v565
    %681 = vmatpush.msra.mxu0 %v562
    %682 = vmatpush.msra.mxu0 %v559
    %683 = vmatpush.msra.mxu0 %v556
    %684 = vmatpush.msra.mxu0 %v553
    %685 = vmatpush.msra.mxu0 %v550
    %686 = vmatpush.msra.mxu0 %v547
    %687 = vmatpush.msra.mxu0 %v544
    %688 = vmatmul.f32.gmra.mxu0 %v567
    %v689 = vpop.f32.mrf.mxu0
    %v690 = vadd.f32 0.0, %v689
    %691 = vmatmul.f32.gmra.mxu0 %v570
    %v692 = vpop.f32.mrf.mxu0
    %v693 = vadd.f32 0.0, %v692
    %694 = vmatmul.f32.gmra.mxu0 %v573
    %v695 = vpop.f32.mrf.mxu0
    %v696 = vadd.f32 0.0, %v695
    %697 = vmatmul.f32.gmra.mxu0 %v576
    %v698 = vpop.f32.mrf.mxu0
    %v699 = vadd.f32 0.0, %v698
    %700 = vmatmul.f32.gmra.mxu0 %v579
    %v701 = vpop.f32.mrf.mxu0
    %v702 = vadd.f32 0.0, %v701
    %703 = vmatmul.f32.gmra.mxu0 %v582
    %v704 = vpop.f32.mrf.mxu0
    %v705 = vadd.f32 0.0, %v704
    %706 = vmatmul.f32.gmra.mxu0 %v585
    %v707 = vpop.f32.mrf.mxu0
    %v708 = vadd.f32 0.0, %v707
    %709 = vmatmul.f32.gmra.mxu0 %v588
    %v710 = vpop.f32.mrf.mxu0
    %v711 = vadd.f32 0.0, %v710
    %712 = vdwg.mxu0
    %v713 = vld [vmem:[%s1] sm:$0xff]
    %v714 = vld [vmem:[%s1 + $0x8] sm:$0xff]
    %v715 = vld [vmem:[%s1 + $0x10] sm:$0xff]
    %v716 = vld [vmem:[%s1 + $0x18] sm:$0xff]
    %v717 = vld [vmem:[%s1 + $0x20] sm:$0xff]
    %v718 = vld [vmem:[%s1 + $0x28] sm:$0xff]
    %v719 = vld [vmem:[%s1 + $0x30] sm:$0xff]
    %v720 = vld [vmem:[%s1 + $0x38] sm:$0xff]
    %v721 = vmul.f32 %v690, %v713
    %v722 = vmul.f32 %v693, %v714
    %v723 = vmul.f32 %v696, %v715
    %v724 = vmul.f32 %v699, %v716
    %v725 = vmul.f32 %v702, %v717
    %v726 = vmul.f32 %v705, %v718
    %v727 = vmul.f32 %v708, %v719
    %v728 = vmul.f32 %v711, %v720
    %v729 = vld [vmem:[%s14] sm:$0xff]
    %v730 = vld [vmem:[%s14 + $0x8] sm:$0xff]
    %v731 = vld [vmem:[%s14 + $0x10] sm:$0xff]
    %v732 = vld [vmem:[%s14 + $0x18] sm:$0xff]
    %v733 = vld [vmem:[%s14 + $0x20] sm:$0xff]
    %v734 = vld [vmem:[%s14 + $0x28] sm:$0xff]
    %v735 = vld [vmem:[%s14 + $0x30] sm:$0xff]
    %v736 = vld [vmem:[%s14 + $0x38] sm:$0xff]
    %v737 = vld [vmem:[%s14 + $0x40] sm:$0xff]
    %v738 = vld [vmem:[%s14 + $0x48] sm:$0xff]
    %v739 = vld [vmem:[%s14 + $0x50] sm:$0xff]
    %v740 = vld [vmem:[%s14 + $0x58] sm:$0xff]
    %v741 = vld [vmem:[%s14 + $0x60] sm:$0xff]
    %v742 = vld [vmem:[%s14 + $0x68] sm:$0xff]
    %v743 = vld [vmem:[%s14 + $0x70] sm:$0xff]
    %v744 = vld [vmem:[%s14 + $0x78] sm:$0xff]
    %v745 = vmul.f32 %v608, %v295
    %v746 = vmul.f32 %v611, %v296
    %v747 = vmul.f32 %v614, %v297
    %v748 = vmul.f32 %v617, %v298
    %v749 = vmul.f32 %v620, %v299
    %v750 = vmul.f32 %v623, %v300
    %v751 = vmul.f32 %v626, %v301
    %v752 = vmul.f32 %v629, %v302
    %v753 = vld [vmem:[%s13] sm:$0xff]
    %v754 = vld [vmem:[%s13 + $0x8] sm:$0xff]
    %v755 = vld [vmem:[%s13 + $0x10] sm:$0xff]
    %v756 = vld [vmem:[%s13 + $0x18] sm:$0xff]
    %v757 = vld [vmem:[%s13 + $0x20] sm:$0xff]
    %v758 = vld [vmem:[%s13 + $0x28] sm:$0xff]
    %v759 = vld [vmem:[%s13 + $0x30] sm:$0xff]
    %v760 = vld [vmem:[%s13 + $0x38] sm:$0xff]
    %v761 = vld [vmem:[%s13 + $0x40] sm:$0xff]
    %v762 = vld [vmem:[%s13 + $0x48] sm:$0xff]
    %v763 = vld [vmem:[%s13 + $0x50] sm:$0xff]
    %v764 = vld [vmem:[%s13 + $0x58] sm:$0xff]
    %v765 = vld [vmem:[%s13 + $0x60] sm:$0xff]
    %v766 = vld [vmem:[%s13 + $0x68] sm:$0xff]
    %v767 = vld [vmem:[%s13 + $0x70] sm:$0xff]
    %v768 = vld [vmem:[%s13 + $0x78] sm:$0xff]
    %769 = vmatpush.msra.mxu0 %v768
    %770 = vmatpush.msra.mxu0 %v767
    %771 = vmatpush.msra.mxu0 %v766
    %772 = vmatpush.msra.mxu0 %v765
    %773 = vmatpush.msra.mxu0 %v764
    %774 = vmatpush.msra.mxu0 %v763
    %775 = vmatpush.msra.mxu0 %v762
    %776 = vmatpush.msra.mxu0 %v761
    %777 = vmatpush.msra.mxu0 %v760
    %778 = vmatpush.msra.mxu0 %v759
    %779 = vmatpush.msra.mxu0 %v758
    %780 = vmatpush.msra.mxu0 %v757
    %781 = vmatpush.msra.mxu0 %v756
    %782 = vmatpush.msra.mxu0 %v755
    %783 = vmatpush.msra.mxu0 %v754
    %784 = vmatpush.msra.mxu0 %v753
    %785 = vmatmul.f32.gmra.mxu0 %v745
    %v786 = vpop.f32.mrf.mxu0
    %v787 = vadd.f32 0.0, %v786
    %788 = vmatmul.f32.gmra.mxu0 %v746
    %v789 = vpop.f32.mrf.mxu0
    %v790 = vadd.f32 0.0, %v789
    %791 = vmatmul.f32.gmra.mxu0 %v747
    %v792 = vpop.f32.mrf.mxu0
    %v793 = vadd.f32 0.0, %v792
    %794 = vmatmul.f32.gmra.mxu0 %v748
    %v795 = vpop.f32.mrf.mxu0
    %v796 = vadd.f32 0.0, %v795
    %797 = vmatmul.f32.gmra.mxu0 %v749
    %v798 = vpop.f32.mrf.mxu0
    %v799 = vadd.f32 0.0, %v798
    %800 = vmatmul.f32.gmra.mxu0 %v750
    %v801 = vpop.f32.mrf.mxu0
    %v802 = vadd.f32 0.0, %v801
    %803 = vmatmul.f32.gmra.mxu0 %v751
    %v804 = vpop.f32.mrf.mxu0
    %v805 = vadd.f32 0.0, %v804
    %806 = vmatmul.f32.gmra.mxu0 %v752
    %v807 = vpop.f32.mrf.mxu0
    %v808 = vadd.f32 0.0, %v807
    %809 = vdwg.mxu0
    %810 = vmatpush.msra.mxu0 %v744
    %811 = vmatpush.msra.mxu0 %v743
    %812 = vmatpush.msra.mxu0 %v742
    %813 = vmatpush.msra.mxu0 %v741
    %814 = vmatpush.msra.mxu0 %v740
    %815 = vmatpush.msra.mxu0 %v739
    %816 = vmatpush.msra.mxu0 %v738
    %817 = vmatpush.msra.mxu0 %v737
    %818 = vmatpush.msra.mxu0 %v736
    %819 = vmatpush.msra.mxu0 %v735
    %820 = vmatpush.msra.mxu0 %v734
    %821 = vmatpush.msra.mxu0 %v733
    %822 = vmatpush.msra.mxu0 %v732
    %823 = vmatpush.msra.mxu0 %v731
    %824 = vmatpush.msra.mxu0 %v730
    %825 = vmatpush.msra.mxu0 %v729
    %826 = vmatmul.f32.gmra.mxu0 %v721
    %v827 = vpop.f32.mrf.mxu0
    %v828 = vadd.f32 %v787, %v827
    %829 = vmatmul.f32.gmra.mxu0 %v722
    %v830 = vpop.f32.mrf.mxu0
    %v831 = vadd.f32 %v790, %v830
    %832 = vmatmul.f32.gmra.mxu0 %v723
    %v833 = vpop.f32.mrf.mxu0
    %v834 = vadd.f32 %v793, %v833
    %835 = vmatmul.f32.gmra.mxu0 %v724
    %v836 = vpop.f32.mrf.mxu0
    %v837 = vadd.f32 %v796, %v836
    %838 = vmatmul.f32.gmra.mxu0 %v725
    %v839 = vpop.f32.mrf.mxu0
    %v840 = vadd.f32 %v799, %v839
    %841 = vmatmul.f32.gmra.mxu0 %v726
    %v842 = vpop.f32.mrf.mxu0
    %v843 = vadd.f32 %v802, %v842
    %844 = vmatmul.f32.gmra.mxu0 %v727
    %v845 = vpop.f32.mrf.mxu0
    %v846 = vadd.f32 %v805, %v845
    %847 = vmatmul.f32.gmra.mxu0 %v728
    %v848 = vpop.f32.mrf.mxu0
    %v849 = vadd.f32 %v808, %v848
    %850 = vdwg.mxu0
    %v851 = vmul.f32 %v649, %v295
    %v852 = vmul.f32 %v652, %v296
    %v853 = vmul.f32 %v655, %v297
    %v854 = vmul.f32 %v658, %v298
    %v855 = vmul.f32 %v661, %v299
    %v856 = vmul.f32 %v664, %v300
    %v857 = vmul.f32 %v667, %v301
    %v858 = vmul.f32 %v670, %v302
    %s859 = scalar_lea.vmem %s13, 128
    %v860 = vld [vmem:[%s859] sm:$0xff]
    %v861 = vld [vmem:[%s859 + $0x8] sm:$0xff]
    %v862 = vld [vmem:[%s859 + $0x10] sm:$0xff]
    %v863 = vld [vmem:[%s859 + $0x18] sm:$0xff]
    %v864 = vld [vmem:[%s859 + $0x20] sm:$0xff]
    %v865 = vld [vmem:[%s859 + $0x28] sm:$0xff]
    %v866 = vld [vmem:[%s859 + $0x30] sm:$0xff]
    %v867 = vld [vmem:[%s859 + $0x38] sm:$0xff]
    %v868 = vld [vmem:[%s859 + $0x40] sm:$0xff]
    %v869 = vld [vmem:[%s859 + $0x48] sm:$0xff]
    %v870 = vld [vmem:[%s859 + $0x50] sm:$0xff]
    %v871 = vld [vmem:[%s859 + $0x58] sm:$0xff]
    %v872 = vld [vmem:[%s859 + $0x60] sm:$0xff]
    %v873 = vld [vmem:[%s859 + $0x68] sm:$0xff]
    %v874 = vld [vmem:[%s859 + $0x70] sm:$0xff]
    %v875 = vld [vmem:[%s859 + $0x78] sm:$0xff]
    %876 = vmatpush.msra.mxu0 %v875
    %877 = vmatpush.msra.mxu0 %v874
    %878 = vmatpush.msra.mxu0 %v873
    %879 = vmatpush.msra.mxu0 %v872
    %880 = vmatpush.msra.mxu0 %v871
    %881 = vmatpush.msra.mxu0 %v870
    %882 = vmatpush.msra.mxu0 %v869
    %883 = vmatpush.msra.mxu0 %v868
    %884 = vmatpush.msra.mxu0 %v867
    %885 = vmatpush.msra.mxu0 %v866
    %886 = vmatpush.msra.mxu0 %v865
    %887 = vmatpush.msra.mxu0 %v864
    %888 = vmatpush.msra.mxu0 %v863
    %889 = vmatpush.msra.mxu0 %v862
    %890 = vmatpush.msra.mxu0 %v861
    %891 = vmatpush.msra.mxu0 %v860
    %892 = vmatmul.f32.gmra.mxu0 %v851
    %v893 = vpop.f32.mrf.mxu0
    %v894 = vadd.f32 0.0, %v893
    %895 = vmatmul.f32.gmra.mxu0 %v852
    %v896 = vpop.f32.mrf.mxu0
    %v897 = vadd.f32 0.0, %v896
    %898 = vmatmul.f32.gmra.mxu0 %v853
    %v899 = vpop.f32.mrf.mxu0
    %v900 = vadd.f32 0.0, %v899
    %901 = vmatmul.f32.gmra.mxu0 %v854
    %v902 = vpop.f32.mrf.mxu0
    %v903 = vadd.f32 0.0, %v902
    %904 = vmatmul.f32.gmra.mxu0 %v855
    %v905 = vpop.f32.mrf.mxu0
    %v906 = vadd.f32 0.0, %v905
    %907 = vmatmul.f32.gmra.mxu0 %v856
    %v908 = vpop.f32.mrf.mxu0
    %v909 = vadd.f32 0.0, %v908
    %910 = vmatmul.f32.gmra.mxu0 %v857
    %v911 = vpop.f32.mrf.mxu0
    %v912 = vadd.f32 0.0, %v911
    %913 = vmatmul.f32.gmra.mxu0 %v858
    %v914 = vpop.f32.mrf.mxu0
    %v915 = vadd.f32 0.0, %v914
    %916 = vdwg.mxu0
    %v917 = vadd.f32 %v828, %v894
    %v918 = vadd.f32 %v831, %v897
    %v919 = vadd.f32 %v834, %v900
    %v920 = vadd.f32 %v837, %v903
    %v921 = vadd.f32 %v840, %v906
    %v922 = vadd.f32 %v843, %v909
    %v923 = vadd.f32 %v846, %v912
    %v924 = vadd.f32 %v849, %v915
    %v925 = vld [vmem:[%s15] sm:$0x1]
    %v927 = vperm.slane %v925, 0
    %v929 = vadd.f32 %v917, %v927
    %v930 = vadd.f32 %v918, %v927
    %v931 = vadd.f32 %v919, %v927
    %v932 = vadd.f32 %v920, %v927
    %v933 = vadd.f32 %v921, %v927
    %v934 = vadd.f32 %v922, %v927
    %v935 = vadd.f32 %v923, %v927
    %v936 = vadd.f32 %v924, %v927
    %vm937 = vcmask 261120
    %938 = vst.msk [vmem:[%s16] sm:$0xff] %vm937, %v929
    %939 = vst.msk [vmem:[%s16 + $0x8] sm:$0xff] %vm937, %v930
    %940 = vst.msk [vmem:[%s16 + $0x10] sm:$0xff] %vm937, %v931
    %941 = vst.msk [vmem:[%s16 + $0x18] sm:$0xff] %vm937, %v932
    %942 = vst.msk [vmem:[%s16 + $0x20] sm:$0xff] %vm937, %v933
    %943 = vst.msk [vmem:[%s16 + $0x28] sm:$0xff] %vm937, %v934
    %944 = vst.msk [vmem:[%s16 + $0x30] sm:$0xff] %vm937, %v935
    %945 = vst.msk [vmem:[%s16 + $0x38] sm:$0xff] %vm937, %v936
    // Predicated region
    $region86: #{tpu_custom_call.1} parent=1 // pred_check
      _
    $region87: #{tpu_custom_call.1} parent=1 // pred_check_branch
      %947 = sbr.rel (0) target = $region89
    $region88: #{tpu_custom_call.1} parent=1 // pred_region
      _
    $region89: #{tpu_custom_call.1} parent=1 // pred_fallthru
      _
    // Predicated region
    $region90: #{tpu_custom_call.1} parent=1 // pred_check
      _
    $region91: #{tpu_custom_call.1} parent=1 // pred_check_branch
      %949 = sbr.rel (0) target = $region93
    $region92: #{tpu_custom_call.1} parent=1 // pred_region
      _
    $region93: #{tpu_custom_call.1} parent=1 // pred_fallthru
      _
    %950 = vsyncpa [#allocation3], 1
    %951 = vsyncpa [#allocation5], 1
    %952 = vsyncpa [#allocation8], 1

</llo_original>
